<compile_context>
chip_gen: v7x
topology: tpu7x:2x2x1
jax: 0.10.0
libtpu: 0.0.40
codegen_flags: <defaults>
</compile_context>

<pallas_src>
from functools import partial

import jax
import jax.numpy as jnp
from jax.experimental import pallas as pl
from jax.experimental.pallas import tpu as pltpu


def _round_up(x, m):
    return ((x + m - 1) // m) * m


def _mxu_depth():
    """Systolic-array depth/width: 256 on v6e/v7x, 128 on v5e and older."""
    try:
        kind = jax.devices()[0].device_kind.lower()
    except Exception:
        return 128
    return 256 if ("v6" in kind or "v7" in kind) else 128


def _vmem_capacity_bytes():
    """Physical VMEM per TensorCore; fall back to the v7x 64 MiB (safe lower bound)."""
    try:
        cap = getattr(pltpu.get_tpu_info(), "vmem_capacity_bytes", None)
        if cap:
            return int(cap)
    except Exception:
        pass
    return 64 << 20


# ---------------------------------------------------------------------------
# Kernel: matmul / relu / matmul / relu / matmul / tanh on lane-dense tiles.
# ---------------------------------------------------------------------------
def qdefunc4_kernel(x_ref, w1_ref, b1_ref, w2_ref, b2_ref, w4_ref, b4_ref,
                    out_ref):
    # x arrives f32 straight from HBM (no wrapper-side astype pass); the bf16
    # cast is a VPU op hidden under the MXU/DMA.  Accumulation, bias adds and
    # relu/tanh stay f32 so the elementwise path is v5e-safe (no bf16 VPU/EUP).
    x = x_ref[...].astype(jnp.bfloat16)
    h = jnp.dot(x, w1_ref[...], preferred_element_type=jnp.float32)
    h = jnp.maximum(h + b1_ref[...], 0.0)                    # relu(linear1)
    h = jnp.dot(h.astype(jnp.bfloat16), w2_ref[...],
                preferred_element_type=jnp.float32)
    h = jnp.maximum(h + b2_ref[...], 0.0)                    # relu(linear2) == z2 branch
    z = jnp.dot(h.astype(jnp.bfloat16), w4_ref[...],
                preferred_element_type=jnp.float32)
    out_ref[...] = jnp.tanh(z + b4_ref[...]).astype(out_ref.dtype)


def qdefunc4_forward(x, params, input_channels, hidden_channels,
                     tile_rows=65536, out_dtype=jnp.float32):
    """x: (B, hidden_channels) f32 -> (B, hidden_channels, input_channels).

    tile_rows: target original batch rows per grid step.  Large (16k-64k) by
    default so each step does several microseconds of work against the ~0.35us
    per-step pipeline overhead; the actual tile is clamped to a VMEM budget.
    out_dtype: float32 matches the PyTorch module; bfloat16 halves the output
    HBM write stream (numerics are already bf16-operand limited upstream).
    """
    B, H = x.shape
    assert H == hidden_channels
    assert (input_channels * hidden_channels) % 2 == 0, \
        "input_channels * hidden_channels must be even"
    w1t, b1, w2t, b2, w4t, b4 = params
    lin = w1t.shape[1]
    half = w4t.shape[1]
    assert 2 * half == input_channels * hidden_channels
    full = 2 * half

    # --- generation-aware row packing ----------------------------------------
    mxu = _mxu_depth()
    if full <= 128 and 128 % full == 0:
        pack = 128 // full            # smallest pack giving 128-lane-dense output
        # Grow pack while every packed GEMM still fits one MXU tile pass:
        #   K(linear1)=pack*H, K(linear2/4)=pack*lin  <= MXU depth
        #   N(linear4)=pack*full                      <= 2 result tiles
        while (2 * pack * lin <= mxu and 2 * pack * H <= mxu
               and 2 * pack * full <= 2 * mxu):
            pack *= 2                 # -> 8 on v6e/v7x, 4 on v5e for default sizes
    else:
        pack = 1                      # fallback: correct, masked stores

    # --- block-diagonal packed weights (tiny; resident in VMEM) --------------
    eye = jnp.eye(pack, dtype=jnp.float32)
    w4dup = jnp.concatenate([w4t, w4t], axis=1)              # torch.cat fold (z2 == z)
    w1p = jnp.kron(eye, w1t).astype(jnp.bfloat16)            # (pack*H,   pack*lin)
    w2p = jnp.kron(eye, w2t).astype(jnp.bfloat16)            # (pack*lin, pack*lin)
    w4p = jnp.kron(eye, w4dup).astype(jnp.bfloat16)          # (pack*lin, pack*full)
    b1p = jnp.tile(b1, (1, pack))                            # biases stay f32
    b2p = jnp.tile(b2, (1, pack))
    b4p = jnp.tile(jnp.concatenate([b4, b4], axis=1), (1, pack))
    weight_bytes = (2 * (w1p.size + w2p.size + w4p.size)
                    + 4 * (b1p.size + b2p.size + b4p.size))

    # --- batch packing: no wrapper astype, pad only to a multiple of `pack` --
    rem = B % pack
    if rem:
        x = jnp.concatenate([x, jnp.zeros((pack - rem, H), x.dtype)], axis=0)
    n_rows = x.shape[0] // pack
    x_packed = x.reshape(n_rows, pack * H)    # row-major: free under jit

    # --- tile sizing under an explicit VMEM budget ----------------------------
    out_sz = jnp.dtype(out_dtype).itemsize
    vmem_cap = _vmem_capacity_bytes()
    # double-buffered in/out blocks + f32/bf16 kernel temporaries, per packed row
    bytes_per_row = (2 * pack * H * 4 + 2 * pack * full * out_sz
                     + pack * (2 * H + 6 * lin + 4 * full + out_sz * full))
    tp_cap = max(16, min(8192,
                         (int(vmem_cap * 0.55) - weight_bytes) // bytes_per_row))
    tgt = max(16, tile_rows // pack)
    tp = min(tgt, tp_cap)
    if tp >= n_rows:
        if n_rows >= 256:
            tp = _round_up(-(-n_rows // 2), 16)   # grid==2: keep both v7x TCs busy
        else:
            tp = n_rows                            # block == array: exact, no boundary
    else:
        tp = max(16, (tp // 16) * 16)              # 16-row multiple (bf16 sublane tile)
    grid = pl.cdiv(n_rows, tp)                     # partial last block handled by Pallas

    const = lambda a: pl.BlockSpec(a.shape, lambda i: (0, 0))

    out_packed = pl.pallas_call(
        qdefunc4_kernel,
        out_shape=jax.ShapeDtypeStruct((n_rows, pack * full), out_dtype),
        grid=(grid,),
        in_specs=[
            pl.BlockSpec((tp, pack * H), lambda i: (i, 0)),
            const(w1p), const(b1p),   # constant index maps -> weights/biases stay
            const(w2p), const(b2p),   # resident in VMEM across all grid steps
            const(w4p), const(b4p),
        ],
        out_specs=pl.BlockSpec((tp, pack * full), lambda i: (i, 0)),
        compiler_params=pltpu.CompilerParams(
            # batch axis is embarrassingly parallel -> megacore sharding on v7x;
            # explicit VMEM limit so the large tiles stay portable (64 MiB v7x).
            dimension_semantics=("parallel",),
            vmem_limit_bytes=int(vmem_cap * 0.75)),
    )(x_packed, w1p, b1p, w2p, b2p, w4p, b4p)

    # Row-major (n_rows, pack*full) == (n_rows*pack, full); slice only when the
    # batch was padded (<= pack-1 rows), then the torch-style .view().
    out = out_packed.reshape(n_rows * pack, full)
    if rem:
        out = out[:B]
    return out.reshape(B, hidden_channels, input_channels)


def init_params(key, input_channels, hidden_channels, lin_size=32):
    """Deterministic synthetic parameters (PyTorch Linear convention: W is
    (out, in); we store W^T so the kernel does x @ W^T directly)."""
    k1, k2, k3, k4, kb1, kb4 = jax.random.split(key, 6)
    half = input_channels * hidden_channels // 2

    w1 = jax.random.normal(k1, (lin_size, hidden_channels), jnp.float32) * 0.1
    b1 = jax.random.normal(kb1, (1, lin_size), jnp.float32) * 0.1

    # geotorch.orthogonal(linear2/3, 'weight') -> orthogonal square weights
    w2 = jnp.linalg.qr(jax.random.normal(k2, (lin_size, lin_size), jnp.float32))[0]
    b2 = jnp.zeros((1, lin_size), jnp.float32)
    w3 = jnp.linalg.qr(jax.random.normal(k3, (lin_size, lin_size), jnp.float32))[0]
    del w3  # dead branch in the original forward (see kernel note)

    w4 = jax.random.normal(k4, (half, lin_size), jnp.float32) * 0.1
    b4 = jax.random.normal(kb4, (1, half), jnp.float32) * 0.1

    return (w1.T, b1, w2.T, b2, w4.T, b4)


def qdefunc4_reference(x, params, input_channels, hidden_channels):
    """Pure-JAX reference with the same bf16-operand / f32-accumulate matmuls."""
    w1t, b1, w2t, b2, w4t, b4 = params
    bf = jnp.bfloat16
    h = jnp.dot(x.astype(bf), w1t.astype(bf),
                preferred_element_type=jnp.float32) + b1
    h = jnp.maximum(h, 0.0)
    h = jnp.dot(h.astype(bf), w2t.astype(bf),
                preferred_element_type=jnp.float32) + b2
    h = jnp.maximum(h, 0.0)
    z = jnp.tanh(jnp.dot(h.astype(bf), w4t.astype(bf),
                         preferred_element_type=jnp.float32) + b4)
    zz = jnp.concatenate([z, z], axis=1)        # z2 == z (dead linear3 branch)
    return zz.reshape(x.shape[0], hidden_channels, input_channels)


if __name__ == "__main__":
    input_channels = 4
    hidden_channels = 16
    lin_size = 32
    batch = 8

    key = jax.random.PRNGKey(0)
    kx, kp, kx2, kx3 = jax.random.split(key, 4)
    params = init_params(kp, input_channels, hidden_channels, lin_size)

    fwd = jax.jit(partial(qdefunc4_forward, input_channels=input_channels,
                          hidden_channels=hidden_channels))
    # Deliberately small tile for the multi-tile test only (production keeps the
    # large default; this exercises grid>1 + the partial boundary block).
    fwd_small_tiles = jax.jit(partial(qdefunc4_forward,
                                      input_channels=input_channels,
                                      hidden_channels=hidden_channels,
                                      tile_rows=512))

    # Small-batch check (single exact tile, no padding).
    z = jax.random.normal(kx, (batch, hidden_channels), jnp.float32)
    out = jax.block_until_ready(fwd(z, params))
    ref = qdefunc4_reference(z, params, input_channels, hidden_channels)
    assert out.shape == (batch, hidden_channels, input_channels)
    assert jnp.allclose(out, ref, atol=2e-2, rtol=2e-2)

    # Larger batch with the default (large) tile.
    z_big = jax.random.normal(kx2, (1000, hidden_channels), jnp.float32)
    ref_big = qdefunc4_reference(z_big, params, input_channels, hidden_channels)
    out_big = jax.block_until_ready(fwd(z_big, params))
    assert out_big.shape == (1000, hidden_channels, input_channels)
    assert jnp.allclose(out_big, ref_big, atol=2e-2, rtol=2e-2)

    # Multi-tile check: grid > 1, partial boundary block, megacore sharding.
    out_tiled = jax.block_until_ready(fwd_small_tiles(z_big, params))
    assert jnp.allclose(out_tiled, ref_big, atol=2e-2, rtol=2e-2)

    # Batch not divisible by pack: exercises the tiny pad + [:B] slice path.
    z_odd = jax.random.normal(kx3, (37, hidden_channels), jnp.float32)
    out_odd = jax.block_until_ready(fwd(z_odd, params))
    ref_odd = qdefunc4_reference(z_odd, params, input_channels, hidden_channels)
    assert out_odd.shape == (37, hidden_channels, input_channels)
    assert jnp.allclose(out_odd, ref_odd, atol=2e-2, rtol=2e-2)

    print("KERNEL_OK")
</pallas_src>

<mosaic_0001>
module attributes {stable_mosaic.version = 11 : i64} {
  func.func @qdefunc4_kernel(%arg0: i32, %arg1: memref<2x64xf32, #tpu.memory_space<vmem>>, %arg2: memref<64x128xbf16, #tpu.memory_space<vmem>>, %arg3: memref<1x128xf32, #tpu.memory_space<vmem>>, %arg4: memref<128x128xbf16, #tpu.memory_space<vmem>>, %arg5: memref<1x128xf32, #tpu.memory_space<vmem>>, %arg6: memref<128x256xbf16, #tpu.memory_space<vmem>>, %arg7: memref<1x256xf32, #tpu.memory_space<vmem>>, %arg8: memref<2x256xf32, #tpu.memory_space<vmem>>) attributes {dimension_semantics = [#tpu.dimension_semantics<parallel>], iteration_bounds = array<i64: 1>, scalar_prefetch = 0 : i64, scratch_operands = 0 : i64, tpu.core_type = #tpu.core_type<tc>, window_params = [{transform_indices = @transform_0, window_bounds = array<i64: 2, 64>}, {pipeline_mode = #tpu.pipeline_mode<synchronous>, transform_indices = @transform_1, window_bounds = array<i64: 64, 128>}, {pipeline_mode = #tpu.pipeline_mode<synchronous>, transform_indices = @transform_2, window_bounds = array<i64: 1, 128>}, {pipeline_mode = #tpu.pipeline_mode<synchronous>, transform_indices = @transform_3, window_bounds = array<i64: 128, 128>}, {pipeline_mode = #tpu.pipeline_mode<synchronous>, transform_indices = @transform_4, window_bounds = array<i64: 1, 128>}, {pipeline_mode = #tpu.pipeline_mode<synchronous>, transform_indices = @transform_5, window_bounds = array<i64: 128, 256>}, {pipeline_mode = #tpu.pipeline_mode<synchronous>, transform_indices = @transform_6, window_bounds = array<i64: 1, 256>}, {transform_indices = @transform_7, window_bounds = array<i64: 2, 256>}]} {
    %c0 = arith.constant 0 : index
    %c0_0 = arith.constant 0 : index
    %0 = vector.load %arg1[%c0, %c0_0] : memref<2x64xf32, #tpu.memory_space<vmem>>, vector<2x64xf32>
    %1 = arith.truncf %0 : vector<2x64xf32> to vector<2x64xbf16>
    %c0_1 = arith.constant 0 : index
    %c0_2 = arith.constant 0 : index
    %2 = vector.load %arg2[%c0_1, %c0_2] : memref<64x128xbf16, #tpu.memory_space<vmem>>, vector<64x128xbf16>
    %cst = arith.constant dense<0.000000e+00> : vector<2x128xf32>
    %3 = tpu.matmul %1, %2, %cst {dimension_numbers = #tpu.dot_dimension_numbers<[1], [0], [0], [1], [0, 0, 1, 1], [], []>} : vector<2x64xbf16>, vector<64x128xbf16>, vector<2x128xf32> -> vector<2x128xf32>
    %c0_3 = arith.constant 0 : index
    %c0_4 = arith.constant 0 : index
    %4 = vector.load %arg3[%c0_3, %c0_4] : memref<1x128xf32, #tpu.memory_space<vmem>>, vector<1x128xf32>
    %5 = vector.broadcast %4 : vector<1x128xf32> to vector<2x128xf32>
    %6 = arith.addf %3, %5 : vector<2x128xf32>
    %cst_5 = arith.constant 0.000000e+00 : f32
    %7 = vector.broadcast %cst_5 : f32 to vector<2x128xf32>
    %8 = arith.maximumf %6, %7 : vector<2x128xf32>
    %9 = arith.truncf %8 : vector<2x128xf32> to vector<2x128xbf16>
    %c0_6 = arith.constant 0 : index
    %c0_7 = arith.constant 0 : index
    %10 = vector.load %arg4[%c0_6, %c0_7] : memref<128x128xbf16, #tpu.memory_space<vmem>>, vector<128x128xbf16>
    %cst_8 = arith.constant dense<0.000000e+00> : vector<2x128xf32>
    %11 = tpu.matmul %9, %10, %cst_8 {dimension_numbers = #tpu.dot_dimension_numbers<[1], [0], [0], [1], [0, 0, 1, 1], [], []>} : vector<2x128xbf16>, vector<128x128xbf16>, vector<2x128xf32> -> vector<2x128xf32>
    %c0_9 = arith.constant 0 : index
    %c0_10 = arith.constant 0 : index
    %12 = vector.load %arg5[%c0_9, %c0_10] : memref<1x128xf32, #tpu.memory_space<vmem>>, vector<1x128xf32>
    %13 = vector.broadcast %12 : vector<1x128xf32> to vector<2x128xf32>
    %14 = arith.addf %11, %13 : vector<2x128xf32>
    %cst_11 = arith.constant 0.000000e+00 : f32
    %15 = vector.broadcast %cst_11 : f32 to vector<2x128xf32>
    %16 = arith.maximumf %14, %15 : vector<2x128xf32>
    %17 = arith.truncf %16 : vector<2x128xf32> to vector<2x128xbf16>
    %c0_12 = arith.constant 0 : index
    %c0_13 = arith.constant 0 : index
    %18 = vector.load %arg6[%c0_12, %c0_13] : memref<128x256xbf16, #tpu.memory_space<vmem>>, vector<128x256xbf16>
    %cst_14 = arith.constant dense<0.000000e+00> : vector<2x256xf32>
    %19 = tpu.matmul %17, %18, %cst_14 {dimension_numbers = #tpu.dot_dimension_numbers<[1], [0], [0], [1], [0, 0, 1, 1], [], []>} : vector<2x128xbf16>, vector<128x256xbf16>, vector<2x256xf32> -> vector<2x256xf32>
    %c0_15 = arith.constant 0 : index
    %c0_16 = arith.constant 0 : index
    %20 = vector.load %arg7[%c0_15, %c0_16] : memref<1x256xf32, #tpu.memory_space<vmem>>, vector<1x256xf32>
    %21 = vector.broadcast %20 : vector<1x256xf32> to vector<2x256xf32>
    %22 = arith.addf %19, %21 : vector<2x256xf32>
    %23 = math.tanh %22 : vector<2x256xf32>
    %c0_17 = arith.constant 0 : index
    %c0_18 = arith.constant 0 : index
    %24 = vector.load %arg8[%c0_17, %c0_18] : memref<2x256xf32, #tpu.memory_space<vmem>>, vector<2x256xf32>
    tpu.vector_store %arg8[%c0_17, %c0_18], %23 {strides = array<i32>} : memref<2x256xf32, #tpu.memory_space<vmem>>, vector<2x256xf32>,
    return
  }
  func.func @transform_0(%arg0: i32) -> (i32, i32) {
    %c0_i32 = arith.constant 0 : i32
    %c0_i32_0 = arith.constant 0 : i32
    return %arg0, %c0_i32 : i32, i32
  }
  func.func @transform_1(%arg0: i32) -> (i32, i32) {
    %c0_i32 = arith.constant 0 : i32
    %c0_i32_0 = arith.constant 0 : i32
    %c0_i32_1 = arith.constant 0 : i32
    return %c0_i32, %c0_i32_0 : i32, i32
  }
  func.func @transform_2(%arg0: i32) -> (i32, i32) {
    %c0_i32 = arith.constant 0 : i32
    %c0_i32_0 = arith.constant 0 : i32
    %c0_i32_1 = arith.constant 0 : i32
    return %c0_i32, %c0_i32_0 : i32, i32
  }
  func.func @transform_3(%arg0: i32) -> (i32, i32) {
    %c0_i32 = arith.constant 0 : i32
    %c0_i32_0 = arith.constant 0 : i32
    %c0_i32_1 = arith.constant 0 : i32
    return %c0_i32, %c0_i32_0 : i32, i32
  }
  func.func @transform_4(%arg0: i32) -> (i32, i32) {
    %c0_i32 = arith.constant 0 : i32
    %c0_i32_0 = arith.constant 0 : i32
    %c0_i32_1 = arith.constant 0 : i32
    return %c0_i32, %c0_i32_0 : i32, i32
  }
  func.func @transform_5(%arg0: i32) -> (i32, i32) {
    %c0_i32 = arith.constant 0 : i32
    %c0_i32_0 = arith.constant 0 : i32
    %c0_i32_1 = arith.constant 0 : i32
    return %c0_i32, %c0_i32_0 : i32, i32
  }
  func.func @transform_6(%arg0: i32) -> (i32, i32) {
    %c0_i32 = arith.constant 0 : i32
    %c0_i32_0 = arith.constant 0 : i32
    %c0_i32_1 = arith.constant 0 : i32
    return %c0_i32, %c0_i32_0 : i32, i32
  }
  func.func @transform_7(%arg0: i32) -> (i32, i32) {
    %c0_i32 = arith.constant 0 : i32
    %c0_i32_0 = arith.constant 0 : i32
    return %arg0, %c0_i32 : i32, i32
  }
}

</mosaic_0001>

<llo_original>
// kernel: qdefunc4_forward.1
$region0: #{qdefunc4_forward.1}
  #allocation0 [shape = 'u32[]', space=smem, size = 0x4, offset = 0x4, fixed_abs, tag = 'smem constant byte address 0x4 - core index']
  #allocation1 [shape = 'u32[144,128]{1,0:T(1,128)}', space=vmem, size = 0x12000, scoped, tag = 'internal scratch']
  %s0 = inlined_call_operand.vmem [shape: f32[2,64], index: 0, kind: input, shape index: {}]
  %s1 = inlined_call_operand.vmem [shape: bf16[64,128], index: 1, kind: input, shape index: {}]
  %s2 = inlined_call_operand.vmem [shape: f32[1,128], index: 2, kind: input, shape index: {}]
  %s3 = inlined_call_operand.vmem [shape: bf16[128,128], index: 3, kind: input, shape index: {}]
  %s4 = inlined_call_operand.vmem [shape: f32[1,128], index: 4, kind: input, shape index: {}]
  %s5 = inlined_call_operand.vmem [shape: bf16[128,256], index: 5, kind: input, shape index: {}]
  %s6 = inlined_call_operand.vmem [shape: f32[1,256], index: 6, kind: input, shape index: {}]
  %s7 = inlined_call_operand.vmem [shape: f32[2,256], index: 7, kind: output, shape index: {}]
  %s8 = sld [smem:[#allocation0]]
  $region38: #{qdefunc4_forward.1} parent=0
    _
  %s10 = ssub.s32 1, %s8
  %s11 = scalar_select 0, %s10, %s8
  // Predicated region
  $region2: #{qdefunc4_forward.1} parent=0 // pred_check
    _
  $region3: #{qdefunc4_forward.1} parent=0 // pred_check_branch
    %13 = sbr.rel (0) target = $region5
  $region4: #{qdefunc4_forward.1} parent=0 // pred_region
    _
  $region5: #{qdefunc4_forward.1} parent=0 // pred_fallthru
    _
  // Predicated region
  $region6: #{qdefunc4_forward.1} parent=0 // pred_check
    _
  $region7: #{qdefunc4_forward.1} parent=0 // pred_check_branch
    %15 = sbr.rel (0) target = $region9
  $region8: #{qdefunc4_forward.1} parent=0 // pred_region
    _
  $region9: #{qdefunc4_forward.1} parent=0 // pred_fallthru
    _
  // Predicated region
  $region10: #{qdefunc4_forward.1} parent=0 // pred_check
    _
  $region11: #{qdefunc4_forward.1} parent=0 // pred_check_branch
    %17 = sbr.rel (0) target = $region13
  $region12: #{qdefunc4_forward.1} parent=0 // pred_region
    _
  $region13: #{qdefunc4_forward.1} parent=0 // pred_fallthru
    _
  // Predicated region
  $region14: #{qdefunc4_forward.1} parent=0 // pred_check
    _
  $region15: #{qdefunc4_forward.1} parent=0 // pred_check_branch
    %19 = sbr.rel (0) target = $region17
  $region16: #{qdefunc4_forward.1} parent=0 // pred_region
    _
  $region17: #{qdefunc4_forward.1} parent=0 // pred_fallthru
    _
  // Predicated region
  $region18: #{qdefunc4_forward.1} parent=0 // pred_check
    _
  $region19: #{qdefunc4_forward.1} parent=0 // pred_check_branch
    %21 = sbr.rel (0) target = $region21
  $region20: #{qdefunc4_forward.1} parent=0 // pred_region
    _
  $region21: #{qdefunc4_forward.1} parent=0 // pred_fallthru
    _
  // Predicated region
  $region22: #{qdefunc4_forward.1} parent=0 // pred_check
    _
  $region23: #{qdefunc4_forward.1} parent=0 // pred_check_branch
    %23 = sbr.rel (0) target = $region25
  $region24: #{qdefunc4_forward.1} parent=0 // pred_region
    _
  $region25: #{qdefunc4_forward.1} parent=0 // pred_fallthru
    _
  // Predicated region
  $region26: #{qdefunc4_forward.1} parent=0 // pred_check
    _
  $region27: #{qdefunc4_forward.1} parent=0 // pred_check_branch
    %25 = sbr.rel (0) target = $region29
  $region28: #{qdefunc4_forward.1} parent=0 // pred_region
    _
  $region29: #{qdefunc4_forward.1} parent=0 // pred_fallthru
    _
  %v27 = vld [vmem:[%s0] sm:$0x3]
  %v28 = vpack.c.bf16 %v27, %v27
  %v29 = vld [vmem:[%s1] sm:$0xf]
  %v30 = vld [vmem:[%s1 + $0x4] sm:$0xf]
  %v31 = vld [vmem:[%s1 + $0x8] sm:$0xf]
  %v32 = vld [vmem:[%s1 + $0xc] sm:$0xf]
  %v33 = vld [vmem:[%s1 + $0x10] sm:$0xf]
  %v34 = vld [vmem:[%s1 + $0x14] sm:$0xf]
  %v35 = vld [vmem:[%s1 + $0x18] sm:$0xf]
  %v36 = vld [vmem:[%s1 + $0x1c] sm:$0xf]
  %v37 = vld [vmem:[%s2] sm:$0x1]
  %v39 = vlaneseq
  %v40 = vshrl.u32 %v39, 7
  %v41 = vsub.s32 0, %v40
  %v42 = vrot.slane %v37, %v41
  %v52 = vunpack.c.l.b16 %v29
  %v53 = vunpack.c.l.b16 %v30
  %v54 = vunpack.c.l.b16 %v31
  %v55 = vunpack.c.l.b16 %v32
  %v56 = vunpack.c.l.b16 %v33
  %v57 = vunpack.c.l.b16 %v34
  %v58 = vunpack.c.l.b16 %v35
  %v59 = vunpack.c.l.b16 %v36
  %v60 = vpack.c.b16 %v53, %v52
  %v61 = vpack.c.b16 %v55, %v54
  %v62 = vpack.c.b16 %v57, %v56
  %v63 = vpack.c.b16 %v59, %v58
  %vm68 = vcmask 523264
  %v70 = vsel %vm68, %v28, 0
  %72 = vmatprep.subr.bf16.mxu0 0
  %73 = vmatpush1.bf16.msra.mxu0 %v60
  %74 = vmatprep.subr.bf16.mxu0 0
  %75 = vmatpush1.bf16.msra.mxu0 %v61
  %76 = vmatprep.subr.bf16.mxu0 0
  %77 = vmatpush1.bf16.msra.mxu0 %v62
  %78 = vmatprep.subr.bf16.mxu0 0
  %79 = vmatpush1.bf16.msra.mxu0 %v63
  %80 = vmatprep.subr.bf16.mxu0 0
  %81 = vmatpush1.bf16.msra.mxu0 0
  %82 = vmatprep.subr.bf16.mxu0 0
  %83 = vmatpush1.bf16.msra.mxu0 0
  %84 = vmatprep.subr.bf16.mxu0 0
  %85 = vmatpush1.bf16.msra.mxu0 0
  %86 = vmatprep.subr.bf16.mxu0 0
  %87 = vmatpush1.bf16.msra.mxu0 0
  %88 = vmatprep.subr.bf16.mxu0 0
  %89 = vmatpush1.bf16.msra.mxu0 0
  %90 = vmatprep.subr.bf16.mxu0 0
  %91 = vmatpush1.bf16.msra.mxu0 0
  %92 = vmatprep.subr.bf16.mxu0 0
  %93 = vmatpush1.bf16.msra.mxu0 0
  %94 = vmatprep.subr.bf16.mxu0 0
  %95 = vmatpush1.bf16.msra.mxu0 0
  %96 = vmatprep.subr.bf16.mxu0 0
  %97 = vmatpush1.bf16.msra.mxu0 0
  %98 = vmatprep.subr.bf16.mxu0 0
  %99 = vmatpush1.bf16.msra.mxu0 0
  %100 = vmatprep.subr.bf16.mxu0 0
  %101 = vmatpush1.bf16.msra.mxu0 0
  %102 = vmatprep.subr.bf16.mxu0 0
  %103 = vmatpush1.bf16.msra.mxu0 0
  %104 = vmatprep.mubr.bf16.mxu0 0
  %105 = vmatmul.mubr.bf16.gmra.mrb[0].mxu0 %v70
  %v106 = vpop.f32.mrb[0].mxu0
  %v107 = vadd.f32 %v42, %v106
  %v108 = vpop.f32.mrb[0].mxu0
  %v109 = vpop.f32.mrb[0].mxu0
  %v110 = vpop.f32.mrb[0].mxu0
  %111 = vdwg.mxu0
  %v112 = vmax.f32 %v107, 0.0
  %v113 = vpack.c.bf16 %v112, %v112
  %v114 = vld [vmem:[%s3] sm:$0xf]
  %v115 = vld [vmem:[%s3 + $0x4] sm:$0xf]
  %v116 = vld [vmem:[%s3 + $0x8] sm:$0xf]
  %v117 = vld [vmem:[%s3 + $0xc] sm:$0xf]
  %v118 = vld [vmem:[%s3 + $0x10] sm:$0xf]
  %v119 = vld [vmem:[%s3 + $0x14] sm:$0xf]
  %v120 = vld [vmem:[%s3 + $0x18] sm:$0xf]
  %v121 = vld [vmem:[%s3 + $0x1c] sm:$0xf]
  %v122 = vld [vmem:[%s3 + $0x20] sm:$0xf]
  %v123 = vld [vmem:[%s3 + $0x24] sm:$0xf]
  %v124 = vld [vmem:[%s3 + $0x28] sm:$0xf]
  %v125 = vld [vmem:[%s3 + $0x2c] sm:$0xf]
  %v126 = vld [vmem:[%s3 + $0x30] sm:$0xf]
  %v127 = vld [vmem:[%s3 + $0x34] sm:$0xf]
  %v128 = vld [vmem:[%s3 + $0x38] sm:$0xf]
  %v129 = vld [vmem:[%s3 + $0x3c] sm:$0xf]
  %v130 = vld [vmem:[%s4] sm:$0x1]
  %v132 = vlaneseq
  %v133 = vshrl.u32 %v132, 7
  %v134 = vsub.s32 0, %v133
  %v135 = vrot.slane %v130, %v134
  %v153 = vunpack.c.l.b16 %v114
  %v154 = vunpack.c.l.b16 %v115
  %v155 = vunpack.c.l.b16 %v116
  %v156 = vunpack.c.l.b16 %v117
  %v157 = vunpack.c.l.b16 %v118
  %v158 = vunpack.c.l.b16 %v119
  %v159 = vunpack.c.l.b16 %v120
  %v160 = vunpack.c.l.b16 %v121
  %v161 = vunpack.c.l.b16 %v122
  %v162 = vunpack.c.l.b16 %v123
  %v163 = vunpack.c.l.b16 %v124
  %v164 = vunpack.c.l.b16 %v125
  %v165 = vunpack.c.l.b16 %v126
  %v166 = vunpack.c.l.b16 %v127
  %v167 = vunpack.c.l.b16 %v128
  %v168 = vunpack.c.l.b16 %v129
  %v169 = vpack.c.b16 %v154, %v153
  %v170 = vpack.c.b16 %v156, %v155
  %v171 = vpack.c.b16 %v158, %v157
  %v172 = vpack.c.b16 %v160, %v159
  %v173 = vpack.c.b16 %v162, %v161
  %v174 = vpack.c.b16 %v164, %v163
  %v175 = vpack.c.b16 %v166, %v165
  %v176 = vpack.c.b16 %v168, %v167
  %185 = vmatprep.subr.bf16.mxu0 0
  %186 = vmatpush1.bf16.msra.mxu0 %v169
  %187 = vmatprep.subr.bf16.mxu0 0
  %188 = vmatpush1.bf16.msra.mxu0 %v170
  %189 = vmatprep.subr.bf16.mxu0 0
  %190 = vmatpush1.bf16.msra.mxu0 %v171
  %191 = vmatprep.subr.bf16.mxu0 0
  %192 = vmatpush1.bf16.msra.mxu0 %v172
  %193 = vmatprep.subr.bf16.mxu0 0
  %194 = vmatpush1.bf16.msra.mxu0 %v173
  %195 = vmatprep.subr.bf16.mxu0 0
  %196 = vmatpush1.bf16.msra.mxu0 %v174
  %197 = vmatprep.subr.bf16.mxu0 0
  %198 = vmatpush1.bf16.msra.mxu0 %v175
  %199 = vmatprep.subr.bf16.mxu0 0
  %200 = vmatpush1.bf16.msra.mxu0 %v176
  %201 = vmatprep.subr.bf16.mxu0 0
  %202 = vmatpush1.bf16.msra.mxu0 0
  %203 = vmatprep.subr.bf16.mxu0 0
  %204 = vmatpush1.bf16.msra.mxu0 0
  %205 = vmatprep.subr.bf16.mxu0 0
  %206 = vmatpush1.bf16.msra.mxu0 0
  %207 = vmatprep.subr.bf16.mxu0 0
  %208 = vmatpush1.bf16.msra.mxu0 0
  %209 = vmatprep.subr.bf16.mxu0 0
  %210 = vmatpush1.bf16.msra.mxu0 0
  %211 = vmatprep.subr.bf16.mxu0 0
  %212 = vmatpush1.bf16.msra.mxu0 0
  %213 = vmatprep.subr.bf16.mxu0 0
  %214 = vmatpush1.bf16.msra.mxu0 0
  %215 = vmatprep.subr.bf16.mxu0 0
  %216 = vmatpush1.bf16.msra.mxu0 0
  %217 = vmatprep.mubr.bf16.mxu0 0
  %218 = vmatmul.mubr.bf16.gmra.mrb[0].mxu0 %v113
  %v219 = vpop.f32.mrb[0].mxu0
  %v220 = vadd.f32 %v135, %v219
  %v221 = vpop.f32.mrb[0].mxu0
  %v222 = vpop.f32.mrb[0].mxu0
  %v223 = vpop.f32.mrb[0].mxu0
  %224 = vdwg.mxu0
  %v225 = vmax.f32 %v220, 0.0
  %v226 = vpack.c.bf16 %v225, %v225
  %v227 = vld [vmem:[%s5] sm:$0xff]
  %v228 = vld [vmem:[%s5 + $0x8] sm:$0xff]
  %v229 = vld [vmem:[%s5 + $0x10] sm:$0xff]
  %v230 = vld [vmem:[%s5 + $0x18] sm:$0xff]
  %v231 = vld [vmem:[%s5 + $0x20] sm:$0xff]
  %v232 = vld [vmem:[%s5 + $0x28] sm:$0xff]
  %v233 = vld [vmem:[%s5 + $0x30] sm:$0xff]
  %v234 = vld [vmem:[%s5 + $0x38] sm:$0xff]
  %v235 = vld [vmem:[%s5 + $0x40] sm:$0xff]
  %v236 = vld [vmem:[%s5 + $0x48] sm:$0xff]
  %v237 = vld [vmem:[%s5 + $0x50] sm:$0xff]
  %v238 = vld [vmem:[%s5 + $0x58] sm:$0xff]
  %v239 = vld [vmem:[%s5 + $0x60] sm:$0xff]
  %v240 = vld [vmem:[%s5 + $0x68] sm:$0xff]
  %v241 = vld [vmem:[%s5 + $0x70] sm:$0xff]
  %v242 = vld [vmem:[%s5 + $0x78] sm:$0xff]
  %v243 = vld [vmem:[%s6] sm:$0x3]
  %v245 = vlaneseq
  %v246 = vshrl.u32 %v245, 7
  %v247 = vsub.s32 0, %v246
  %v248 = vrot.slane %v243, %v247
  %v249 = vlaneseq
  %v250 = vshrl.u32 %v249, 7
  %v251 = vsub.s32 1, %v250
  %v252 = vrot.slane %v243, %v251
  %v271 = vunpack.c.l.b16 %v227
  %v272 = vunpack.c.h.b16 %v227
  %v273 = vunpack.c.l.b16 %v228
  %v274 = vunpack.c.h.b16 %v228
  %v275 = vunpack.c.l.b16 %v229
  %v276 = vunpack.c.h.b16 %v229
  %v277 = vunpack.c.l.b16 %v230
  %v278 = vunpack.c.h.b16 %v230
  %v279 = vunpack.c.l.b16 %v231
  %v280 = vunpack.c.h.b16 %v231
  %v281 = vunpack.c.l.b16 %v232
  %v282 = vunpack.c.h.b16 %v232
  %v283 = vunpack.c.l.b16 %v233
  %v284 = vunpack.c.h.b16 %v233
  %v285 = vunpack.c.l.b16 %v234
  %v286 = vunpack.c.h.b16 %v234
  %v287 = vunpack.c.l.b16 %v235
  %v288 = vunpack.c.h.b16 %v235
  %v289 = vunpack.c.l.b16 %v236
  %v290 = vunpack.c.h.b16 %v236
  %v291 = vunpack.c.l.b16 %v237
  %v292 = vunpack.c.h.b16 %v237
  %v293 = vunpack.c.l.b16 %v238
  %v294 = vunpack.c.h.b16 %v238
  %v295 = vunpack.c.l.b16 %v239
  %v296 = vunpack.c.h.b16 %v239
  %v297 = vunpack.c.l.b16 %v240
  %v298 = vunpack.c.h.b16 %v240
  %v299 = vunpack.c.l.b16 %v241
  %v300 = vunpack.c.h.b16 %v241
  %v301 = vunpack.c.l.b16 %v242
  %v302 = vunpack.c.h.b16 %v242
  %v303 = vpack.c.b16 %v273, %v271
  %v304 = vpack.c.b16 %v274, %v272
  %v305 = vpack.c.b16 %v277, %v275
  %v306 = vpack.c.b16 %v278, %v276
  %v307 = vpack.c.b16 %v281, %v279
  %v308 = vpack.c.b16 %v282, %v280
  %v309 = vpack.c.b16 %v285, %v283
  %v310 = vpack.c.b16 %v286, %v284
  %v311 = vpack.c.b16 %v289, %v287
  %v312 = vpack.c.b16 %v290, %v288
  %v313 = vpack.c.b16 %v293, %v291
  %v314 = vpack.c.b16 %v294, %v292
  %v315 = vpack.c.b16 %v297, %v295
  %v316 = vpack.c.b16 %v298, %v296
  %v317 = vpack.c.b16 %v301, %v299
  %v318 = vpack.c.b16 %v302, %v300
  %335 = vmatprep.subr.bf16.mxu0 %v304
  %336 = vmatpush1.bf16.msra.mxu0 %v303
  %337 = vmatprep.subr.bf16.mxu0 %v306
  %338 = vmatpush1.bf16.msra.mxu0 %v305
  %339 = vmatprep.subr.bf16.mxu0 %v308
  %340 = vmatpush1.bf16.msra.mxu0 %v307
  %341 = vmatprep.subr.bf16.mxu0 %v310
  %342 = vmatpush1.bf16.msra.mxu0 %v309
  %343 = vmatprep.subr.bf16.mxu0 %v312
  %344 = vmatpush1.bf16.msra.mxu0 %v311
  %345 = vmatprep.subr.bf16.mxu0 %v314
  %346 = vmatpush1.bf16.msra.mxu0 %v313
  %347 = vmatprep.subr.bf16.mxu0 %v316
  %348 = vmatpush1.bf16.msra.mxu0 %v315
  %349 = vmatprep.subr.bf16.mxu0 %v318
  %350 = vmatpush1.bf16.msra.mxu0 %v317
  %351 = vmatprep.subr.bf16.mxu0 0
  %352 = vmatpush1.bf16.msra.mxu0 0
  %353 = vmatprep.subr.bf16.mxu0 0
  %354 = vmatpush1.bf16.msra.mxu0 0
  %355 = vmatprep.subr.bf16.mxu0 0
  %356 = vmatpush1.bf16.msra.mxu0 0
  %357 = vmatprep.subr.bf16.mxu0 0
  %358 = vmatpush1.bf16.msra.mxu0 0
  %359 = vmatprep.subr.bf16.mxu0 0
  %360 = vmatpush1.bf16.msra.mxu0 0
  %361 = vmatprep.subr.bf16.mxu0 0
  %362 = vmatpush1.bf16.msra.mxu0 0
  %363 = vmatprep.subr.bf16.mxu0 0
  %364 = vmatpush1.bf16.msra.mxu0 0
  %365 = vmatprep.subr.bf16.mxu0 0
  %366 = vmatpush1.bf16.msra.mxu0 0
  %367 = vmatprep.mubr.bf16.mxu0 0
  %368 = vmatmul.mubr.bf16.gmra.mrb[0].mxu0 %v226
  %v369 = vpop.f32.mrb[0].mxu0
  %v370 = vadd.f32 %v248, %v369
  %v371 = vpop.f32.mrb[0].mxu0
  %v372 = vadd.f32 %v252, %v371
  %v373 = vpop.f32.mrb[0].mxu0
  %v374 = vpop.f32.mrb[0].mxu0
  %375 = vdwg.mxu0
  %v376 = vtanh.pop %v370
  %v377 = vtanh.pop %v372
  %v380 = vcombine.low %v376, %v377
  %v382 = vunpack.c.l.s4 1983009808
  %v383 = vunpack.c.0.s8 %v382
  %v384 = vlaneseq
  %v385 = vshrl.u32 %v384, 7
  %v386 = vsub.s32 %v383, %v385
  %v387 = vrot.slane %v380, %v386
  %389 = vst [vmem:[%s7] sm:$0xf] %v387
  // Predicated region
  $region30: #{qdefunc4_forward.1} parent=0 // pred_check
    _
  $region31: #{qdefunc4_forward.1} parent=0 // pred_check_branch
    %391 = sbr.rel (0) target = $region33
  $region32: #{qdefunc4_forward.1} parent=0 // pred_region
    _
  $region33: #{qdefunc4_forward.1} parent=0 // pred_fallthru
    _
  // Predicated region
  $region34: #{qdefunc4_forward.1} parent=0 // pred_check
    _
  $region35: #{qdefunc4_forward.1} parent=0 // pred_check_branch
    %393 = sbr.rel (0) target = $region37
  $region36: #{qdefunc4_forward.1} parent=0 // pred_region
    _
  $region37: #{qdefunc4_forward.1} parent=0 // pred_fallthru
    _

</llo_original>
